<compile_context>
chip_gen: v7x
topology: tpu7x:2x2x1
jax: 0.10.0
libtpu: 0.0.40
codegen_flags: <defaults>
</compile_context>

<pallas_src>
import math
from functools import partial

import jax
import jax.numpy as jnp
from jax.experimental import pallas as pl
from jax.experimental.pallas import tpu as pltpu

LN_EPS = 1e-5                     # PyTorch nn.LayerNorm default


def _chip_config():
    """Generation-aware VMEM budget and tile caps."""
    try:
        vmem_cap = pltpu.get_tpu_info().vmem_capacity_bytes
    except Exception:
        vmem_cap = 64 * 1024 * 1024          # conservative (v7x-sized) default
    if vmem_cap >= 128 * 1024 * 1024:        # v5e / v6e: 128 MiB per TensorCore
        return {"vmem_limit": 100 * 1024 * 1024, "tm": 1024, "tn": 1024, "tk": 2048}
    # v7x: 64 MiB physical per TC -> leave headroom for compiler scratch.
    return {"vmem_limit": 44 * 1024 * 1024, "tm": 512, "tn": 512, "tk": 1024}


_CFG = _chip_config()
VMEM_LIMIT = _CFG["vmem_limit"]


def _pick_tile(dim, cap, *, align=128, min_steps=1):
    """Largest multiple of `align` that divides `dim`, is <= `cap`, and leaves
    at least `min_steps` grid steps.  Falls back to the full extent for small
    or unaligned dims (remainder-free)."""
    best = 0
    t = align
    top = min(dim, cap)
    while t <= top:
        if dim % t == 0 and dim // t >= min_steps:
            best = t
        t += align
    return best if best else dim


# --------------------------- tiled matmul kernel ----------------------------

def _matmul_kernel(*refs, epilogue):
    if epilogue == "add_ln":
        x_ref, w_ref, b_ref, r_ref, g_ref, bt_ref, o_ref, acc_ref = refs
    else:
        x_ref, w_ref, b_ref, o_ref, acc_ref = refs

    k = pl.program_id(2)

    @pl.when(k == 0)
    def _():
        acc_ref[...] = jnp.zeros_like(acc_ref)

    # bf16 x bf16 -> f32 on the MXU.
    acc_ref[...] += jnp.dot(x_ref[...], w_ref[...],
                            preferred_element_type=jnp.float32)

    @pl.when(k == pl.num_programs(2) - 1)
    def _():
        y = acc_ref[...] + b_ref[...].astype(jnp.float32)
        if epilogue == "gelu":
            # TODO(synk): PyTorch nn.GELU defaults to the exact erf form; the
            # tanh approximation is used here (reference Encoder not shown).
            y = jax.nn.gelu(y)
        elif epilogue == "add_ln":
            y = y + r_ref[...].astype(jnp.float32)
            mu = jnp.mean(y, axis=-1, keepdims=True)
            c = y - mu
            var = jnp.mean(c * c, axis=-1, keepdims=True)
            y = c * jax.lax.rsqrt(var + LN_EPS)
            y = (y * g_ref[...].astype(jnp.float32)
                 + bt_ref[...].astype(jnp.float32))
        o_ref[...] = y.astype(o_ref.dtype)


def _weight_spec(tk, tn, buffers):
    """Weight BlockSpec, optionally with a deeper pipeline for streamed weights."""
    if buffers != 2:
        try:
            return pl.BlockSpec((tk, tn), lambda i, j, k: (k, j),
                                pipeline_mode=pl.Buffered(buffers))
        except Exception:
            pass   # older JAX without pipeline_mode: default double buffering
    return pl.BlockSpec((tk, tn), lambda i, j, k: (k, j))


def linear(x2d, w, b, *, epilogue=None, residual=None, gamma=None, beta=None,
           out_dtype=None, tm_cap=None, tn_cap=None, tk_cap=None, w_buffers=2):
    """y = epilogue(x @ w + b); epilogue in {None, "gelu", "add_ln"}."""
    M, K = x2d.shape
    N = w.shape[1]
    out_dtype = out_dtype or x2d.dtype

    tm_cap = tm_cap or _CFG["tm"]
    tn_cap = tn_cap or _CFG["tn"]
    tk_cap = tk_cap or _CFG["tk"]

    if epilogue == "add_ln":
        # LayerNorm needs the full feature dim resident in the tile; the j axis
        # then has extent 1, so keep >= 2 i-steps for v7x's two TensorCores.
        tn = N
        tm = _pick_tile(M, tm_cap, min_steps=2)
    else:
        tn = _pick_tile(N, tn_cap)
        tm = _pick_tile(M, tm_cap)
    tk = _pick_tile(K, tk_cap)

    grid = (M // tm, N // tn, K // tk)

    in_specs = [
        pl.BlockSpec((tm, tk), lambda i, j, k: (i, k)),
        _weight_spec(tk, tn, w_buffers),
        pl.BlockSpec((1, tn), lambda i, j, k: (0, j)),
    ]
    args = [x2d, w, b.reshape(1, N)]
    if epilogue == "add_ln":
        in_specs += [
            pl.BlockSpec((tm, tn), lambda i, j, k: (i, j)),
            pl.BlockSpec((1, tn), lambda i, j, k: (0, 0)),
            pl.BlockSpec((1, tn), lambda i, j, k: (0, 0)),
        ]
        args += [residual, gamma.reshape(1, N), beta.reshape(1, N)]

    return pl.pallas_call(
        partial(_matmul_kernel, epilogue=epilogue),
        out_shape=jax.ShapeDtypeStruct((M, N), out_dtype),
        grid_spec=pltpu.PrefetchScalarGridSpec(
            num_scalar_prefetch=0,
            grid=grid,
            in_specs=in_specs,
            out_specs=pl.BlockSpec((tm, tn), lambda i, j, k: (i, j)),
            scratch_shapes=[pltpu.VMEM((tm, tn), jnp.float32)],
        ),
        compiler_params=pltpu.CompilerParams(
            dimension_semantics=("parallel", "parallel", "arbitrary"),
            vmem_limit_bytes=VMEM_LIMIT),
    )(*args)


# ----------------------------- attention kernel -----------------------------

def _attention_kernel(qkv_ref, o_ref, *, num_heads):
    """softmax(Q K^T) V for one batch element, all heads in-kernel.

    The 1/sqrt(D) scale is folded into the Q projection weights at init time,
    so no per-element scaling happens here.
    """
    E = o_ref.shape[-1]
    D = E // num_heads
    outs = []
    for h in range(num_heads):                      # static unrolled loop
        q = qkv_ref[0, :, h * D:(h + 1) * D]
        k = qkv_ref[0, :, E + h * D:E + (h + 1) * D]
        v = qkv_ref[0, :, 2 * E + h * D:2 * E + (h + 1) * D]
        # contract on D of both operands: no materialized K transpose.
        s = jax.lax.dot_general(q, k, (((1,), (1,)), ((), ())),
                                preferred_element_type=jnp.float32)
        m = jnp.max(s, axis=-1, keepdims=True)
        p = jnp.exp(s - m)
        denom = jnp.sum(p, axis=-1, keepdims=True)
        pv = jnp.dot(p.astype(v.dtype), v, preferred_element_type=jnp.float32)
        # Normalize AFTER the PV matmul: multiply an (S, D) tensor instead of
        # the (S, S) probability matrix (~S/D fewer VPU ops per head).
        outs.append((pv * pl.reciprocal(denom, approx=True)).astype(o_ref.dtype))
    # One full-width lane-dense (S, E) store instead of num_heads masked
    # 64-lane partial stores.
    o_ref[0] = jnp.concatenate(outs, axis=-1)
    # TODO(synk): for S >= 1024 switch to a flash-style KV-tiled online softmax
    # with 128-lane-aligned head pairing so the (S, S) scores never materialize
    # (required to fit v7x's 64 MiB VMEM).


def attention(qkv, num_heads):
    """qkv: (B, S, 3E) fused projections -> (B, S, E) context."""
    B, S, E3 = qkv.shape
    E = E3 // 3
    return pl.pallas_call(
        partial(_attention_kernel, num_heads=num_heads),
        out_shape=jax.ShapeDtypeStruct((B, S, E), qkv.dtype),
        grid=(B,),
        in_specs=[pl.BlockSpec((1, S, E3), lambda b: (b, 0, 0))],
        out_specs=pl.BlockSpec((1, S, E), lambda b: (b, 0, 0)),
        compiler_params=pltpu.CompilerParams(
            dimension_semantics=("parallel",),
            vmem_limit_bytes=VMEM_LIMIT),
    )(qkv)


# ------------------------- embedding add + LayerNorm ------------------------

def _embed_ln_kernel(tok_ref, pos_ref, g_ref, b_ref, o_ref):
    x = tok_ref[0].astype(jnp.float32) + pos_ref[...].astype(jnp.float32)
    mu = jnp.mean(x, axis=-1, keepdims=True)
    c = x - mu
    var = jnp.mean(c * c, axis=-1, keepdims=True)
    y = c * jax.lax.rsqrt(var + LN_EPS)
    o_ref[0] = (y * g_ref[...].astype(jnp.float32)
                + b_ref[...].astype(jnp.float32)).astype(o_ref.dtype)


def embed_add_layernorm(tok, pos, gamma, beta):
    """LayerNorm(tok + pos); pos block repeats across batch (no broadcast in HBM)."""
    B, S, E = tok.shape
    return pl.pallas_call(
        _embed_ln_kernel,
        out_shape=jax.ShapeDtypeStruct((B, S, E), tok.dtype),
        grid=(B,),
        in_specs=[
            pl.BlockSpec((1, S, E), lambda b: (b, 0, 0)),
            pl.BlockSpec((S, E), lambda b: (0, 0)),
            pl.BlockSpec((1, E), lambda b: (0, 0)),
            pl.BlockSpec((1, E), lambda b: (0, 0)),
        ],
        out_specs=pl.BlockSpec((1, S, E), lambda b: (b, 0, 0)),
        compiler_params=pltpu.CompilerParams(
            dimension_semantics=("parallel",),
            vmem_limit_bytes=VMEM_LIMIT),
    )(tok, pos, gamma.reshape(1, E), beta.reshape(1, E))


# ------------------------------ model wiring -------------------------------

def init_params(key, *, max_seq, embed, hidden, heads, layers, vocab,
                dtype=jnp.bfloat16):
    head_dim = embed // heads
    inv_sqrt_d = 1.0 / math.sqrt(head_dim)

    def nrm(k, shape, scale=0.02):
        return scale * jax.random.normal(k, shape)          # f32; cast below

    keys = jax.random.split(key, 3 + layers)

    # Lane-align the vocab dim so the final projection streams tn tiles even
    # at unaligned production sizes (e.g. 30522 -> 30720); logits are sliced
    # back to `vocab` after the matmul.
    vocab_pad = ((vocab + 127) // 128) * 128
    out_w = jnp.pad(nrm(keys[2], (embed, vocab)), ((0, 0), (0, vocab_pad - vocab)))

    params = {
        "num_heads": heads,
        "vocab": vocab,
        "tok_emb": nrm(keys[0], (vocab, embed)).astype(dtype),
        "pos_emb": nrm(keys[1], (max_seq, embed)).astype(dtype),
        "emb_ln_g": jnp.ones((embed,), dtype),
        "emb_ln_b": jnp.zeros((embed,), dtype),
        "out_w": out_w.astype(dtype),
        "out_b": jnp.zeros((vocab_pad,), dtype),
        "layers": [],
    }
    for li in range(layers):
        lk = jax.random.split(keys[3 + li], 6)
        # 1/sqrt(D) attention scale folded into the Q projection weights
        # (the Q bias is zero, so no bias folding is needed).
        wq = nrm(lk[0], (embed, embed)) * inv_sqrt_d
        wk = nrm(lk[1], (embed, embed))
        wv = nrm(lk[2], (embed, embed))
        params["layers"].append({
            "wqkv": jnp.concatenate([wq, wk, wv], axis=1).astype(dtype),
            "bqkv": jnp.zeros((3 * embed,), dtype),
            "wo": nrm(lk[3], (embed, embed)).astype(dtype),
            "bo": jnp.zeros((embed,), dtype),
            "w1": nrm(lk[4], (embed, hidden)).astype(dtype),
            "b1": jnp.zeros((hidden,), dtype),
            "w2": nrm(lk[5], (hidden, embed)).astype(dtype),
            "b2": jnp.zeros((embed,), dtype),
            "ln1_g": jnp.ones((embed,), dtype), "ln1_b": jnp.zeros((embed,), dtype),
            "ln2_g": jnp.ones((embed,), dtype), "ln2_b": jnp.zeros((embed,), dtype),
        })
    return params


def encoder_layer(x2d, p, B, S, H):
    M, E = x2d.shape

    # fused QKV projection: one matmul, one read of x2d
    qkv = linear(x2d, p["wqkv"], p["bqkv"])                   # (M, 3E)
    ctx = attention(qkv.reshape(B, S, 3 * E), H)              # (B, S, E)

    # attn output projection with fused residual + LayerNorm epilogue
    x2d = linear(ctx.reshape(M, E), p["wo"], p["bo"],
                 epilogue="add_ln", residual=x2d,
                 gamma=p["ln1_g"], beta=p["ln1_b"])

    # FFN: up-proj with fused GELU, down-proj with fused residual + LayerNorm
    h = linear(x2d, p["w1"], p["b1"], epilogue="gelu")
    x2d = linear(h, p["w2"], p["b2"],
                 epilogue="add_ln", residual=x2d,
                 gamma=p["ln2_g"], beta=p["ln2_b"])
    return x2d


def bert_forward(params, ids):
    B, S = ids.shape
    E = params["tok_emb"].shape[1]

    # Token-id embedding lookup stays an XLA gather (a per-token Pallas grid
    # would be per-step-overhead-bound).
    # TODO(synk): fuse the gather into the add+LN kernel via manual DMA gather
    # from an HBM-resident table to drop one (B,S,E) HBM round trip.
    tok = jnp.take(params["tok_emb"], ids, axis=0)            # (B, S, E)
    x = embed_add_layernorm(tok, params["pos_emb"][:S],
                            params["emb_ln_g"], params["emb_ln_b"])
    # dropout (eval mode) -> identity
    x2d = x.reshape(B * S, E)

    for lp in params["layers"]:
        x2d = encoder_layer(x2d, lp, B, S, params["num_heads"])

    # Final vocab projection: 128-padded weight streamed in tn tiles, bf16
    # logits, tm maximized (big weight read as few times as possible), and a
    # deeper weight pipeline to hide HBM latency.
    logits = linear(x2d, params["out_w"], params["out_b"],
                    tm_cap=4096, tn_cap=512, w_buffers=3)     # (B*S, vocab_pad)
    logits = logits[:, :params["vocab"]]
    return logits.reshape(B, S, -1)


if __name__ == "__main__":
    # Small, shape-consistent configuration.
    max_seq, embed, hidden = 16, 32, 64
    heads, layers, vocab = 4, 2, 64
    B, S = 2, 8

    key = jax.random.PRNGKey(0)
    pkey, dkey = jax.random.split(key)
    params = init_params(pkey, max_seq=max_seq, embed=embed, hidden=hidden,
                         heads=heads, layers=layers, vocab=vocab,
                         dtype=jnp.bfloat16)
    ids = jax.random.randint(dkey, (B, S), 0, vocab, dtype=jnp.int32)

    logits = bert_forward(params, ids)
    logits = jax.block_until_ready(logits)

    assert logits.shape == (B, S, vocab), logits.shape
    assert jnp.all(jnp.isfinite(logits))
    print("KERNEL_OK")
</pallas_src>

<mosaic_0001>
module attributes {stable_mosaic.version = 11 : i64} {
  func.func @_embed_ln_kernel(%arg0: i32, %arg1: memref<1x8x32xbf16, #tpu.memory_space<vmem>>, %arg2: memref<8x32xbf16, #tpu.memory_space<vmem>>, %arg3: memref<1x32xbf16, #tpu.memory_space<vmem>>, %arg4: memref<1x32xbf16, #tpu.memory_space<vmem>>, %arg5: memref<1x8x32xbf16, #tpu.memory_space<vmem>>) attributes {dimension_semantics = [#tpu.dimension_semantics<parallel>], iteration_bounds = array<i64: 2>, scalar_prefetch = 0 : i64, scratch_operands = 0 : i64, tpu.core_type = #tpu.core_type<tc>, window_params = [{transform_indices = @transform_0, window_bounds = array<i64: 1, 8, 32>}, {pipeline_mode = #tpu.pipeline_mode<synchronous>, transform_indices = @transform_1, window_bounds = array<i64: 8, 32>}, {pipeline_mode = #tpu.pipeline_mode<synchronous>, transform_indices = @transform_2, window_bounds = array<i64: 1, 32>}, {pipeline_mode = #tpu.pipeline_mode<synchronous>, transform_indices = @transform_3, window_bounds = array<i64: 1, 32>}, {transform_indices = @transform_4, window_bounds = array<i64: 1, 8, 32>}]} {
    %c0 = arith.constant 0 : index
    %c0_0 = arith.constant 0 : index
    %c0_1 = arith.constant 0 : index
    %0 = vector.load %arg1[%c0, %c0_0, %c0_1] : memref<1x8x32xbf16, #tpu.memory_space<vmem>>, vector<1x8x32xbf16>
    %1 = vector.shape_cast %0 : vector<1x8x32xbf16> to vector<8x32xbf16>
    %2 = arith.extf %1 : vector<8x32xbf16> to vector<8x32xf32>
    %c0_2 = arith.constant 0 : index
    %c0_3 = arith.constant 0 : index
    %3 = vector.load %arg2[%c0_2, %c0_3] : memref<8x32xbf16, #tpu.memory_space<vmem>>, vector<8x32xbf16>
    %4 = arith.extf %3 : vector<8x32xbf16> to vector<8x32xf32>
    %5 = arith.addf %2, %4 : vector<8x32xf32>
    %cst = arith.constant dense<0.000000e+00> : vector<8xf32>
    %6 = vector.multi_reduction <add>, %5, %cst [1] : vector<8x32xf32> to vector<8xf32>
    %7 = vector.shape_cast %6 : vector<8xf32> to vector<8x1xf32>
    %cst_4 = arith.constant 3.200000e+01 : f32
    %8 = vector.broadcast %cst_4 : f32 to vector<8x1xf32>
    %9 = arith.divf %7, %8 : vector<8x1xf32>
    %10 = vector.broadcast %9 : vector<8x1xf32> to vector<8x32xf32>
    %11 = arith.subf %5, %10 : vector<8x32xf32>
    %12 = arith.mulf %11, %11 : vector<8x32xf32>
    %cst_5 = arith.constant dense<0.000000e+00> : vector<8xf32>
    %13 = vector.multi_reduction <add>, %12, %cst_5 [1] : vector<8x32xf32> to vector<8xf32>
    %14 = vector.shape_cast %13 : vector<8xf32> to vector<8x1xf32>
    %cst_6 = arith.constant 3.200000e+01 : f32
    %15 = vector.broadcast %cst_6 : f32 to vector<8x1xf32>
    %16 = arith.divf %14, %15 : vector<8x1xf32>
    %cst_7 = arith.constant 9.99999974E-6 : f32
    %17 = vector.broadcast %cst_7 : f32 to vector<8x1xf32>
    %18 = arith.addf %16, %17 : vector<8x1xf32>
    %19 = math.rsqrt %18 : vector<8x1xf32>
    %20 = vector.broadcast %19 : vector<8x1xf32> to vector<8x32xf32>
    %21 = arith.mulf %11, %20 : vector<8x32xf32>
    %c0_8 = arith.constant 0 : index
    %c0_9 = arith.constant 0 : index
    %22 = vector.load %arg3[%c0_8, %c0_9] : memref<1x32xbf16, #tpu.memory_space<vmem>>, vector<1x32xbf16>
    %23 = arith.extf %22 : vector<1x32xbf16> to vector<1x32xf32>
    %24 = vector.broadcast %23 : vector<1x32xf32> to vector<8x32xf32>
    %25 = arith.mulf %21, %24 : vector<8x32xf32>
    %c0_10 = arith.constant 0 : index
    %c0_11 = arith.constant 0 : index
    %26 = vector.load %arg4[%c0_10, %c0_11] : memref<1x32xbf16, #tpu.memory_space<vmem>>, vector<1x32xbf16>
    %27 = arith.extf %26 : vector<1x32xbf16> to vector<1x32xf32>
    %28 = vector.broadcast %27 : vector<1x32xf32> to vector<8x32xf32>
    %29 = arith.addf %25, %28 : vector<8x32xf32>
    %30 = arith.truncf %29 : vector<8x32xf32> to vector<8x32xbf16>
    %c0_12 = arith.constant 0 : index
    %c0_13 = arith.constant 0 : index
    %c0_14 = arith.constant 0 : index
    %31 = vector.load %arg5[%c0_12, %c0_13, %c0_14] : memref<1x8x32xbf16, #tpu.memory_space<vmem>>, vector<1x8x32xbf16>
    %32 = vector.shape_cast %31 : vector<1x8x32xbf16> to vector<8x32xbf16>
    %33 = vector.shape_cast %30 : vector<8x32xbf16> to vector<1x8x32xbf16>
    tpu.vector_store %arg5[%c0_12, %c0_13, %c0_14], %33 {strides = array<i32>} : memref<1x8x32xbf16, #tpu.memory_space<vmem>>, vector<1x8x32xbf16>,
    return
  }
  func.func @transform_0(%arg0: i32) -> (i32, i32, i32) {
    %c0_i32 = arith.constant 0 : i32
    %c0_i32_0 = arith.constant 0 : i32
    %c0_i32_1 = arith.constant 0 : i32
    return %arg0, %c0_i32, %c0_i32_0 : i32, i32, i32
  }
  func.func @transform_1(%arg0: i32) -> (i32, i32) {
    %c0_i32 = arith.constant 0 : i32
    %c0_i32_0 = arith.constant 0 : i32
    %c0_i32_1 = arith.constant 0 : i32
    return %c0_i32, %c0_i32_0 : i32, i32
  }
  func.func @transform_2(%arg0: i32) -> (i32, i32) {
    %c0_i32 = arith.constant 0 : i32
    %c0_i32_0 = arith.constant 0 : i32
    %c0_i32_1 = arith.constant 0 : i32
    return %c0_i32, %c0_i32_0 : i32, i32
  }
  func.func @transform_3(%arg0: i32) -> (i32, i32) {
    %c0_i32 = arith.constant 0 : i32
    %c0_i32_0 = arith.constant 0 : i32
    %c0_i32_1 = arith.constant 0 : i32
    return %c0_i32, %c0_i32_0 : i32, i32
  }
  func.func @transform_4(%arg0: i32) -> (i32, i32, i32) {
    %c0_i32 = arith.constant 0 : i32
    %c0_i32_0 = arith.constant 0 : i32
    %c0_i32_1 = arith.constant 0 : i32
    return %arg0, %c0_i32, %c0_i32_0 : i32, i32, i32
  }
}

</mosaic_0001>

<llo_original>
// kernel: tpu_custom_call.1
$region0: #{tpu_custom_call.1}
  #allocation0 [shape = 'u32[]', space=smem, size = 0x4, offset = 0x4, fixed_abs, tag = 'smem constant byte address 0x4 - core index']
  #allocation1 [shape = 'u32[144,128]{1,0:T(1,128)}', space=vmem, size = 0x12000, scoped, tag = 'internal scratch']
  %s0 = inlined_call_operand.hbm [shape: bf16[2,8,32], index: 0, kind: input, shape index: {}]
  %s1 = inlined_call_operand.hbm [shape: bf16[8,32], index: 1, kind: input, shape index: {}]
  %s2 = inlined_call_operand.vmem [shape: bf16[1,32], index: 2, kind: input, shape index: {}]
  %s3 = inlined_call_operand.vmem [shape: bf16[1,32], index: 3, kind: input, shape index: {}]
  %s4 = inlined_call_operand.hbm [shape: bf16[2,8,32], index: 4, kind: output, shape index: {}]
  %s5 = sld [smem:[#allocation0]]
  $region57: #{tpu_custom_call.1} parent=0
    _
  %s7 = ssub.s32 1, %s5
  %s8 = scalar_select 0, %s7, %s5
  $region1: #{tpu_custom_call.1} parent=0
    #allocation2 [shape = 'u8[4096]{0}', space=vmem, size = 0x1000, scoped, tag = 'input window, operand 0']
    #allocation3 [shape = 's32[2]{0}', space=sflag, size = 0x8, scoped, tag = 'scoped memory for tpu_custom_call.1']
    #allocation4 [shape = 's32[2]{0}', space=sflag, size = 0x8, scoped, tag = 'scoped memory for tpu_custom_call.1']
    #allocation5 [shape = 'u8[2048]{0}', space=vmem, size = 0x800, scoped, tag = 'input window, operand 1, single buffered']
    #allocation6 [shape = 's32[1]{0}', space=sflag, size = 0x4, scoped, tag = 'scoped memory for tpu_custom_call.1']
    #allocation7 [shape = 'u8[4096]{0}', space=vmem, size = 0x1000, scoped, tag = 'output window, operand 0']
    %9 = vsyncpa [#allocation3], 0
    %s10 = scalar_lea.sflag [#allocation3], 1
    %11 = vsyncpa %s10, 0
    %12 = vsyncpa [#allocation6], 0
    %13 = vsyncpa [#allocation4], 0
    %s14 = scalar_lea.sflag [#allocation4], 1
    %15 = vsyncpa %s14, 0
    loop: start=0, step=1, limit=4
    $region2: #{tpu_custom_call.1} parent=1 // loop_pre_header
      _
    $region3: #{tpu_custom_call.1} parent=1 // loop_header
      %s17 = sphi 0, %s21
      %p18 = scmp.ge.s32.totalorder %s17, 4
      %s27 = sphi 0, %s29
      %s30 = sphi 0, %s27
      %s31 = sphi 0, %s30
      %s47 = sphi 0, %s31
      %s51 = sphi 0, %s51
      %s53 = sphi 0, %s51
      %s54 = sphi 0, %s53
      %s68 = sphi 0, %s54
      %s72 = sphi 0, %s72
      %s74 = sphi 0, %s72
      %s75 = sphi 0, %s74
      %s89 = sphi 0, %s75
      %s93 = sphi 0, %s93
      %s95 = sphi 0, %s93
      %s96 = sphi 0, %s95
      %s110 = sphi 0, %s96
      %s116 = sphi 0, %s118
      %s119 = sphi 0, %s116
      %s120 = sphi 0, %s119
      %s136 = sphi 0, %s120
    $region4: #{tpu_custom_call.1} parent=1 // loop_header_branch
      %20 = sbr.rel (%p18) target = $region8
    $region5: #{tpu_custom_call.1} parent=1 // loop_body
      %s22 = ssub.s32 %s17, 1
      %s23 = ssub.s32 %s17, 2
      %s24 = sadd.s32 %s17, 1
      %s25 = ssub.s32 %s17, %s24
      %p26 = scmp.eq.s32.totalorder %s25, 0
      %s28 = sadd.s32 %s27, 1
      %s29 = scalar_select %p26, %s27, %s28
      %p32 = pneg %p26
      %p33 = scmp.eq.s32.totalorder %s17, 1
      %p34 = por %p32, %p33
      %p35 = scmp.ne.s32.totalorder %s27, %s30
      %p36 = scmp.eq.s32.totalorder %s17, 0
      %p37 = por %p35, %p36
      %p38 = scmp.ne.s32.totalorder %s27, %s30
      %p39 = scmp.eq.s32.totalorder %s22, 1
      %p40 = por %p38, %p39
      %p41 = scmp.ne.s32.totalorder %s30, %s31
      %p42 = scmp.eq.s32.totalorder %s22, 0
      %p43 = por %p41, %p42
      %p44 = scmp.ne.s32.totalorder %s30, %s31
      %p45 = scmp.eq.s32.totalorder %s23, 1
      %p46 = por %p44, %p45
      %p48 = scmp.ne.s32.totalorder %s31, %s47
      %p49 = scmp.eq.s32.totalorder %s23, 0
      %p50 = por %p48, %p49
      %s52 = sadd.s32 %s51, 1
      %p55 = scmp.eq.s32.totalorder %s17, 1
      %p56 = scmp.ne.s32.totalorder %s51, %s53
      %p57 = scmp.eq.s32.totalorder %s17, 0
      %p58 = por %p56, %p57
      %p59 = scmp.ne.s32.totalorder %s51, %s53
      %p60 = scmp.eq.s32.totalorder %s22, 1
      %p61 = por %p59, %p60
      %p62 = scmp.ne.s32.totalorder %s53, %s54
      %p63 = scmp.eq.s32.totalorder %s22, 0
      %p64 = por %p62, %p63
      %p65 = scmp.ne.s32.totalorder %s53, %s54
      %p66 = scmp.eq.s32.totalorder %s23, 1
      %p67 = por %p65, %p66
      %p69 = scmp.ne.s32.totalorder %s54, %s68
      %p70 = scmp.eq.s32.totalorder %s23, 0
      %p71 = por %p69, %p70
      %s73 = sadd.s32 %s72, 1
      %p76 = scmp.eq.s32.totalorder %s17, 1
      %p77 = scmp.ne.s32.totalorder %s72, %s74
      %p78 = scmp.eq.s32.totalorder %s17, 0
      %p79 = por %p77, %p78
      %p80 = scmp.ne.s32.totalorder %s72, %s74
      %p81 = scmp.eq.s32.totalorder %s22, 1
      %p82 = por %p80, %p81
      %p83 = scmp.ne.s32.totalorder %s74, %s75
      %p84 = scmp.eq.s32.totalorder %s22, 0
      %p85 = por %p83, %p84
      %p86 = scmp.ne.s32.totalorder %s74, %s75
      %p87 = scmp.eq.s32.totalorder %s23, 1
      %p88 = por %p86, %p87
      %p90 = scmp.ne.s32.totalorder %s75, %s89
      %p91 = scmp.eq.s32.totalorder %s23, 0
      %p92 = por %p90, %p91
      %s94 = sadd.s32 %s93, 1
      %p97 = scmp.eq.s32.totalorder %s17, 1
      %p98 = scmp.ne.s32.totalorder %s93, %s95
      %p99 = scmp.eq.s32.totalorder %s17, 0
      %p100 = por %p98, %p99
      %p101 = scmp.ne.s32.totalorder %s93, %s95
      %p102 = scmp.eq.s32.totalorder %s22, 1
      %p103 = por %p101, %p102
      %p104 = scmp.ne.s32.totalorder %s95, %s96
      %p105 = scmp.eq.s32.totalorder %s22, 0
      %p106 = por %p104, %p105
      %p107 = scmp.ne.s32.totalorder %s95, %s96
      %p108 = scmp.eq.s32.totalorder %s23, 1
      %p109 = por %p107, %p108
      %p111 = scmp.ne.s32.totalorder %s96, %s110
      %p112 = scmp.eq.s32.totalorder %s23, 0
      %p113 = por %p111, %p112
      %s114 = ssub.s32 %s17, %s24
      %p115 = scmp.eq.s32.totalorder %s114, 0
      %s117 = sadd.s32 %s116, 1
      %s118 = scalar_select %p115, %s116, %s117
      %p121 = pneg %p115
      %p122 = scmp.eq.s32.totalorder %s17, 1
      %p123 = por %p121, %p122
      %p124 = scmp.ne.s32.totalorder %s116, %s119
      %p125 = scmp.eq.s32.totalorder %s17, 0
      %p126 = por %p124, %p125
      %p127 = scmp.ne.s32.totalorder %s116, %s119
      %p128 = scmp.eq.s32.totalorder %s22, 1
      %p129 = por %p127, %p128
      %p130 = scmp.ne.s32.totalorder %s119, %s120
      %p131 = scmp.eq.s32.totalorder %s22, 0
      %p132 = por %p130, %p131
      %p133 = scmp.ne.s32.totalorder %s119, %s120
      %p134 = scmp.eq.s32.totalorder %s23, 1
      %p135 = por %p133, %p134
      %p137 = scmp.ne.s32.totalorder %s120, %s136
      %p138 = scmp.eq.s32.totalorder %s23, 0
      %p139 = por %p137, %p138
      %p140 = scmp.le.s32.totalorder 1, %s17
      %p141 = scmp.lt.s32.totalorder %s17, 3
      %p142 = pnand %p140, %p141
      %p143 = pneg %p142
      // Predicated region
      $region9: #{tpu_custom_call.1} parent=5 // pred_check
        _
      $region10: #{tpu_custom_call.1} parent=5 // pred_check_branch
        %145 = sbr.rel (%p142) target = $region12
      $region11: #{tpu_custom_call.1} parent=5 // pred_region
        %s146 = ssub.s32 %s17, 1
        // Predicated region
        $region13: #{tpu_custom_call.1} parent=11 // pred_check
          %p147 = pneg %p64
        $region14: #{tpu_custom_call.1} parent=11 // pred_check_branch
          %149 = sbr.rel (%p147) target = $region16
        $region15: #{tpu_custom_call.1} parent=11 // pred_region
          %s151 = ssub.s32 64, 64
          %152 = vsyncadd [#allocation6], %s151
          %s154 = sshll.u32 [#allocation5], 4
          %s155 = int_to_ptr.vmem [resolvable:$true] %s154
          %157 = dma.hbm_to_vmem [thread:$0]  %s1, 64, %s155, [#allocation6]
        $region16: #{tpu_custom_call.1} parent=11 // pred_fallthru
          _
        // Predicated region
        $region17: #{tpu_custom_call.1} parent=11 // pred_check
          %p158 = pneg %p85
        $region18: #{tpu_custom_call.1} parent=11 // pred_check_branch
          %160 = sbr.rel (%p158) target = $region20
        $region19: #{tpu_custom_call.1} parent=11 // pred_region
          _
        $region20: #{tpu_custom_call.1} parent=11 // pred_fallthru
          _
        // Predicated region
        $region21: #{tpu_custom_call.1} parent=11 // pred_check
          %p161 = pneg %p106
        $region22: #{tpu_custom_call.1} parent=11 // pred_check_branch
          %163 = sbr.rel (%p161) target = $region24
        $region23: #{tpu_custom_call.1} parent=11 // pred_region
          _
        $region24: #{tpu_custom_call.1} parent=11 // pred_fallthru
          _
      $region12: #{tpu_custom_call.1} parent=5 // pred_fallthru
        _
      %p164 = scmp.lt.s32.totalorder %s17, 2
      // Predicated region
      $region25: #{tpu_custom_call.1} parent=5 // pred_check
        %p165 = pneg %p164
      $region26: #{tpu_custom_call.1} parent=5 // pred_check_branch
        %167 = sbr.rel (%p165) target = $region28
      $region27: #{tpu_custom_call.1} parent=5 // pred_region
        // Predicated region
        $region29: #{tpu_custom_call.1} parent=27 // pred_check
          %p168 = pneg %p37
        $region30: #{tpu_custom_call.1} parent=27 // pred_check_branch
          %170 = sbr.rel (%p168) target = $region32
        $region31: #{tpu_custom_call.1} parent=27 // pred_region
          %s171 = sand.u32 %s27, 1
          %s172 = scalar_lea.sflag [#allocation3], %s171
          %s173 = sand.u32 %s27, 1
          %s174 = smul.addr %s173, 4
          %s175 = scalar_lea.vmem [#allocation2], %s174
          %s177 = ssub.s32 64, 64
          %178 = vsyncadd %s172, %s177
          %s179 = smul.addr %s17, 64
          %s180 = scalar_lea.hbm %s0, %s179
          %s182 = sshll.u32 %s175, 4
          %s183 = int_to_ptr.vmem [resolvable:$true] %s182
          %185 = dma.hbm_to_vmem [thread:$0]  %s180, 64, %s183, %s172
        $region32: #{tpu_custom_call.1} parent=27 // pred_fallthru
          _
      $region28: #{tpu_custom_call.1} parent=5 // pred_fallthru
        _
      %p186 = scmp.le.s32.totalorder 1, %s17
      %p187 = scmp.lt.s32.totalorder %s17, 3
      %p188 = pnand %p186, %p187
      %p189 = pneg %p188
      // Predicated region
      $region33: #{tpu_custom_call.1} parent=5 // pred_check
        _
      $region34: #{tpu_custom_call.1} parent=5 // pred_check_branch
        %191 = sbr.rel (%p188) target = $region36
      $region35: #{tpu_custom_call.1} parent=5 // pred_region
        %s192 = ssub.s32 %s17, 1
        %s193 = sand.u32 %s30, 1
        %s194 = scalar_lea.sflag [#allocation3], %s193
        %s195 = sand.u32 %s30, 1
        %s196 = smul.addr %s195, 4
        %s197 = scalar_lea.vmem [#allocation2], %s196
        // Predicated region
        $region37: #{tpu_custom_call.1} parent=35 // pred_check
          %p198 = pneg %p43
        $region38: #{tpu_custom_call.1} parent=35 // pred_check_branch
          %200 = sbr.rel (%p198) target = $region40
        $region39: #{tpu_custom_call.1} parent=35 // pred_region
          %201 = dma.done %s194, 64
        $region40: #{tpu_custom_call.1} parent=35 // pred_fallthru
          _
        // Predicated region
        $region41: #{tpu_custom_call.1} parent=35 // pred_check
          %p202 = pneg %p64
        $region42: #{tpu_custom_call.1} parent=35 // pred_check_branch
          %204 = sbr.rel (%p202) target = $region44
        $region43: #{tpu_custom_call.1} parent=35 // pred_region
          %205 = dma.done [#allocation6], 64
        $region44: #{tpu_custom_call.1} parent=35 // pred_fallthru
          _
        %s206 = sand.u32 %s30, 1
        %s207 = scalar_lea.sflag [#allocation3], %s206
        %s208 = sand.u32 %s30, 1
        %s209 = smul.addr %s208, 4
        %s210 = scalar_lea.vmem [#allocation2], %s209
        %p211 = pneg %p43
        %p212 = pneg %p40
        %p213 = pneg %p64
        %p214 = pneg %p61
        %p215 = pneg %p85
        %p216 = pneg %p82
        %p217 = pneg %p106
        %p218 = pneg %p103
        %p219 = pneg %p132
        %p220 = pneg %p129
        %s221 = sand.u32 %s119, 1
        %s222 = scalar_lea.sflag [#allocation4], %s221
        %s223 = sand.u32 %s119, 1
        %s224 = smul.addr %s223, 4
        %s225 = scalar_lea.vmem [#allocation7], %s224
        %v226 = vld [vmem:[%s197] sm:$0xf]
        %v227 = vunpack.c.l.bf16 %v226
        %v228 = vld [vmem:[#allocation5] sm:$0xf]
        %v229 = vunpack.c.l.bf16 %v228
        %v230 = vadd.f32 %v227, %v229
        %vm231 = vcmask 261120
        %v232 = vsel %vm231, %v230, 0.0
        %233 = vadd.xlane.f32.xlu0 %v232
        %v234 = vpop.xlane.xlu0 %233
        %v235 = vrcp.pop 32.0
        %v236 = vmul.f32 %v234, %v235
        %v237 = vsub.f32 %v230, %v236
        %v238 = vmul.f32 %v237, %v237
        %v239 = vsel %vm231, %v238, 0.0
        %240 = vadd.xlane.f32.xlu0 %v239
        %v241 = vpop.xlane.xlu0 %240
        %v242 = vmul.f32 %v241, %v235
        %v243 = vadd.f32 %v242, 1e-05
        %v244 = vrsqrt.pop %v243
        %v245 = vmul.f32 %v237, %v244
        %v246 = vld [vmem:[%s2] sm:$0x1]
        %v247 = vunpack.c.l.bf16 %v246
        %v248 = vlaneseq
        %v249 = vshrl.u32 %v248, 7
        %v250 = vsub.s32 0, %v249
        %v251 = vrot.slane %v247, %v250
        %v252 = vmul.f32 %v245, %v251
        %v253 = vld [vmem:[%s3] sm:$0x1]
        %v254 = vunpack.c.l.bf16 %v253
        %v255 = vlaneseq
        %v256 = vshrl.u32 %v255, 7
        %v257 = vsub.s32 0, %v256
        %v258 = vrot.slane %v254, %v257
        %v259 = vadd.f32 %v252, %v258
        %v260 = vpack.c.bf16 %v259, %v259
        %vm261 = vcmask 257024
        %262 = vst.msk [vmem:[%s225] sm:$0xf] %vm261, %v260
        %s263 = sand.u32 %s119, 1
        %s264 = scalar_lea.sflag [#allocation4], %s263
        %s265 = sand.u32 %s119, 1
        %s266 = smul.addr %s265, 4
        %s267 = scalar_lea.vmem [#allocation7], %s266
        // Predicated region
        $region45: #{tpu_custom_call.1} parent=35 // pred_check
          %p268 = pneg %p129
        $region46: #{tpu_custom_call.1} parent=35 // pred_check_branch
          %270 = sbr.rel (%p268) target = $region48
        $region47: #{tpu_custom_call.1} parent=35 // pred_region
          %s272 = ssub.s32 64, 64
          %273 = vsyncadd %s264, %s272
          %s274 = smul.addr %s22, 64
          %s275 = scalar_lea.hbm %s4, %s274
          %s277 = sshll.u32 %s267, 4
          %s278 = int_to_ptr.vmem [resolvable:$true] %s277
          %280 = dma.vmem_to_hbm [thread:$0]  %s278, 64, %s275, %s264
        $region48: #{tpu_custom_call.1} parent=35 // pred_fallthru
          _
      $region36: #{tpu_custom_call.1} parent=5 // pred_fallthru
        _
      %p281 = scmp.le.s32.totalorder 2, %s17
      // Predicated region
      $region49: #{tpu_custom_call.1} parent=5 // pred_check
        %p282 = pneg %p281
      $region50: #{tpu_custom_call.1} parent=5 // pred_check_branch
        %284 = sbr.rel (%p282) target = $region52
      $region51: #{tpu_custom_call.1} parent=5 // pred_region
        %s285 = ssub.s32 %s17, 2
        // Predicated region
        $region53: #{tpu_custom_call.1} parent=51 // pred_check
          %p286 = pneg %p135
        $region54: #{tpu_custom_call.1} parent=51 // pred_check_branch
          %288 = sbr.rel (%p286) target = $region56
        $region55: #{tpu_custom_call.1} parent=51 // pred_region
          %s289 = sand.u32 %s120, 1
          %s290 = scalar_lea.sflag [#allocation4], %s289
          %s291 = sand.u32 %s120, 1
          %s292 = smul.addr %s291, 4
          %s293 = scalar_lea.vmem [#allocation7], %s292
          %294 = dma.done %s290, 64
        $region56: #{tpu_custom_call.1} parent=51 // pred_fallthru
          _
      $region52: #{tpu_custom_call.1} parent=5 // pred_fallthru
        _
    $region6: #{tpu_custom_call.1} parent=1 // loop_footer
      %s21 = sadd.s32 1, %s17
    $region7: #{tpu_custom_call.1} parent=1 // loop_footer_branch
      %16 = sbr.rel target = $region3
    $region8: #{tpu_custom_call.1} parent=1 // loop_exit
      _
    %295 = vsyncpa [#allocation3], 1
    %s296 = scalar_lea.sflag [#allocation3], 1
    %297 = vsyncpa %s296, 1
    %298 = vsyncpa [#allocation6], 1
    %299 = vsyncpa [#allocation4], 1
    %s300 = scalar_lea.sflag [#allocation4], 1
    %301 = vsyncpa %s300, 1

</llo_original>
